<compile_context>
chip_gen: v5e
topology: v5e:2x2
jax: 0.10.0
libtpu: 0.0.40
codegen_flags: <defaults>
</compile_context>

<pallas_src>
import functools

import numpy as np
import jax
import jax.numpy as jnp
from jax.experimental import pallas as pl
from jax.experimental.pallas import tpu as pltpu

# small, module-consistent dimensions
CNN_OUT = 32       # cnn_out
AUG_IN = 8         # augmented_in
MODEL_OUT = 4      # model_out
STEM_C = 16        # channels of the stand-in CNN backbone
CIN = 3            # image channels
H = W = 16
BATCH = 2
BN_EPS = 1e-5
FC1_IN = CNN_OUT + AUG_IN       # 40
ROW_K = CIN * (W + 2)           # 54  (channel-major padded image row length)
IM2ROW_K = 3 * ROW_K            # 162 (3 dy-shifted rows concatenated)
CONV_N = W * STEM_C             # 256 (lane-dense conv output per image row)

# bias/scale slab row indices
R_BCONV, R_BCNN, R_B1, R_G1, R_BE1, R_B2, R_G2, R_BE2, R_B3 = range(9)
SLAB_ROWS = 16


# ------------------------------------------------------------------
# One fused kernel: conv3x3+ReLU+avg-pool+cnn_fc  ->  head
# ------------------------------------------------------------------
def fused_kernel(lhs_ref, data_ref, wband_ref, wpf_ref,
                 w1_ref, w2_ref, w3_ref, slab_ref, o_ref):
    # lhs_ref  : (B*H, 162) bf16  im2row image rows (batch stacked in sublanes)
    # data_ref : (B, 40)    f32   state vector pre-padded into lanes [32, 40)
    # wband_ref: (162, 256) bf16  block-banded im2row conv weight
    # wpf_ref  : (256, 40)  f32   pooled->fc weight, 1/(H*W) folded in
    # slab_ref : (16, 256)  f32   all (1,N) biases/scales packed by row

    # ---- stand-in CNN backbone -----------------------------------
    # Single MXU push for the whole 3x3 conv over the whole batch.
    conv = jnp.dot(lhs_ref[...], wband_ref[...],
                   preferred_element_type=jnp.float32)              # (32, 256)
    conv = jnp.maximum(conv + slab_ref[R_BCONV:R_BCONV + 1, :], 0.0)

    # Global average pool: sum over y per batch (1/(H*W) folded into wpf),
    # then mean-over-x + backbone fc as one (B,256)x(256,40) matmul; x1 lands
    # in lanes [0,32) of a 40-lane vector (lanes [32,40) exactly zero).
    pooled = jnp.sum(conv.reshape(BATCH, H, CONV_N), axis=1)        # (B, 256)
    x1 = (jnp.dot(pooled, wpf_ref[...], preferred_element_type=jnp.float32)
          + slab_ref[R_BCNN:R_BCNN + 1, :FC1_IN])                   # (B, 40)

    # ---- head -----------------------------------------------------
    # torch.cat((x1, data), dim=1) realized as an add of lane-padded operands.
    x = x1 + data_ref[...]                                          # (B, 40)

    # fc1 + BatchNorm1d(180) (training-mode biased batch stats) + ReLU
    h = (jnp.dot(x, w1_ref[...], preferred_element_type=jnp.float32)
         + slab_ref[R_B1:R_B1 + 1, :180])
    mu = jnp.mean(h, axis=0, keepdims=True)
    var = jnp.mean((h - mu) ** 2, axis=0, keepdims=True)
    h = jnp.maximum((h - mu) * jax.lax.rsqrt(var + BN_EPS)
                    * slab_ref[R_G1:R_G1 + 1, :180]
                    + slab_ref[R_BE1:R_BE1 + 1, :180], 0.0)

    # fc2 + BatchNorm1d(50) + ReLU
    h2 = (jnp.dot(h, w2_ref[...], preferred_element_type=jnp.float32)
          + slab_ref[R_B2:R_B2 + 1, :50])
    mu2 = jnp.mean(h2, axis=0, keepdims=True)
    var2 = jnp.mean((h2 - mu2) ** 2, axis=0, keepdims=True)
    h2 = jnp.maximum((h2 - mu2) * jax.lax.rsqrt(var2 + BN_EPS)
                     * slab_ref[R_G2:R_G2 + 1, :50]
                     + slab_ref[R_BE2:R_BE2 + 1, :50], 0.0)

    # fc3
    o_ref[...] = (jnp.dot(h2, w3_ref[...], preferred_element_type=jnp.float32)
                  + slab_ref[R_B3:R_B3 + 1, :MODEL_OUT])


@jax.jit
def state_vision_forward(image_nchw, data, kp):
    B = image_nchw.shape[0]
    # im2row build (layout glue only; XLA fuses it into one small copy).
    # Channel-major rows (k = c*(W+2) + x) avoid the NHWC channels-into-lanes
    # relayout: only a minor-dim-preserving (B,C,H,W)->(B,H,C,W) transpose,
    # a 1-pixel zero halo, and 3 dy-shifted slices concatenated along K.
    x = jnp.transpose(image_nchw, (0, 2, 1, 3))                     # (B,H,C,W)
    xp = jnp.pad(x, ((0, 0), (1, 1), (0, 0), (1, 1)))               # (B,H+2,C,W+2)
    rows = xp.reshape(B, H + 2, ROW_K)                              # (B,18,54)
    lhs = jnp.concatenate([rows[:, 0:H], rows[:, 1:H + 1], rows[:, 2:H + 2]],
                          axis=-1)                                  # (B,H,162)
    lhs = lhs.reshape(B * H, IM2ROW_K).astype(jnp.bfloat16)         # (32,162)
    # data occupies lanes [CNN_OUT, CNN_OUT + AUG_IN) of the fc1 input.
    data40 = jnp.pad(data, ((0, 0), (CNN_OUT, 0)))

    args = (lhs, data40, kp["w_band"], kp["w_pool_fc"],
            kp["w1"], kp["w2"], kp["w3"], kp["slab"])
    vmem = functools.partial(pl.BlockSpec, memory_space=pltpu.MemorySpace.VMEM)
    return pl.pallas_call(
        fused_kernel,
        out_shape=jax.ShapeDtypeStruct((B, MODEL_OUT), jnp.float32),
        in_specs=[vmem() for _ in args],
        out_specs=vmem(),
    )(*args)


# ------------------------------------------------------------------
# Parameters (deterministic, PyTorch-Linear-style uniform init)
# ------------------------------------------------------------------
def init_params(key):
    def uni(k, shape, fan_in):
        bound = 1.0 / float(fan_in) ** 0.5
        return jax.random.uniform(k, shape, jnp.float32, -bound, bound)

    ks = jax.random.split(key, 11)
    p = {}
    p["w_conv"] = uni(ks[0], (3, 3, CIN, STEM_C), 3 * 3 * CIN)
    p["b_conv"] = uni(ks[1], (1, STEM_C), 3 * 3 * CIN)
    p["w_cnn_fc"] = uni(ks[2], (STEM_C, CNN_OUT), STEM_C)
    p["b_cnn_fc"] = uni(ks[3], (1, CNN_OUT), STEM_C)
    # fc1 weight split across [x1 | x2]; kernel uses the concatenated (40,180)
    p["w1a"] = uni(ks[4], (CNN_OUT, 180), FC1_IN)
    p["w1b"] = uni(ks[5], (AUG_IN, 180), FC1_IN)
    p["b1"] = uni(ks[6], (1, 180), FC1_IN)
    p["g1"] = jnp.ones((1, 180), jnp.float32)
    p["be1"] = jnp.zeros((1, 180), jnp.float32)
    p["w2"] = uni(ks[7], (180, 50), 180)
    p["b2"] = uni(ks[8], (1, 50), 180)
    p["g2"] = jnp.ones((1, 50), jnp.float32)
    p["be2"] = jnp.zeros((1, 50), jnp.float32)
    p["w3"] = uni(ks[9], (50, MODEL_OUT), 50)
    p["b3"] = uni(ks[10], (1, MODEL_OUT), 50)
    return p


def pack_kernel_params(p):
    """One-time re-layout of parameters into the lane-dense / pre-folded forms
    the fused kernel consumes (no per-call relayout of tiny operands)."""
    wc = np.asarray(p["w_conv"])                          # (3, 3, CIN, STEM_C)
    # Block-banded im2row weight (channel-major K axis):
    #   band[dy*54 + c*(W+2) + (x+dx), x*STEM_C + o] = w_conv[dy, dx, c, o]
    # so im2row_row(b,y) @ band reproduces the 3x3 conv for output row y,
    # laid out lane-dense as (x*STEM_C + o).
    band = np.zeros((IM2ROW_K, CONV_N), np.float32)
    for dy in range(3):
        for dx in range(3):
            for c in range(CIN):
                for x in range(W):
                    k = dy * ROW_K + c * (W + 2) + (x + dx)
                    band[k, x * STEM_C:(x + 1) * STEM_C] = wc[dy, dx, c]

    kp = {}
    kp["w_band"] = jnp.asarray(band, jnp.bfloat16)                   # (162,256)

    # Fold the (1/(H*W)) average pooling and the backbone fc into one matrix;
    # the extra AUG_IN zero columns pre-pad x1 to the full 40-lane fc1 input.
    wcf_pad = np.concatenate(
        [np.asarray(p["w_cnn_fc"]), np.zeros((STEM_C, AUG_IN), np.float32)],
        axis=1)
    w_pool_fc = np.tile(wcf_pad, (W, 1)) / float(H * W)              # (256, 40)
    # cat([x1, data])-as-add is only valid if x1 lanes [32,40) are exactly 0.
    assert np.all(w_pool_fc[:, CNN_OUT:] == 0.0)
    kp["w_pool_fc"] = jnp.asarray(w_pool_fc)

    kp["w1"] = jnp.concatenate([p["w1a"], p["w1b"]], axis=0)         # (40, 180)
    kp["w2"] = p["w2"]
    kp["w3"] = p["w3"]

    # All (1,N) parameters packed into one (16, 256) slab -> one DMA.
    slab = np.zeros((SLAB_ROWS, CONV_N), np.float32)
    slab[R_BCONV, :CONV_N] = np.tile(np.asarray(p["b_conv"])[0], W)
    slab[R_BCNN, :CNN_OUT] = np.asarray(p["b_cnn_fc"])[0]
    slab[R_B1, :180] = np.asarray(p["b1"])[0]
    slab[R_G1, :180] = np.asarray(p["g1"])[0]
    slab[R_BE1, :180] = np.asarray(p["be1"])[0]
    slab[R_B2, :50] = np.asarray(p["b2"])[0]
    slab[R_G2, :50] = np.asarray(p["g2"])[0]
    slab[R_BE2, :50] = np.asarray(p["be2"])[0]
    slab[R_B3, :MODEL_OUT] = np.asarray(p["b3"])[0]
    assert np.all(slab[R_BCNN, CNN_OUT:] == 0.0)
    kp["slab"] = jnp.asarray(slab)
    return kp


# ------------------------------------------------------------------
# Pure-JAX reference (straightforward math) for a sanity check.
# The conv-stage operands are rounded to bf16 exactly as the kernel does
# (accumulation stays f32), so the comparison isolates structural kernel bugs
# from the intended conv quantization policy; the head stays f32/HIGHEST.
# ------------------------------------------------------------------
def reference_forward(image_nchw, data, p):
    hp = jax.lax.Precision.HIGHEST
    B = image_nchw.shape[0]
    x = jnp.transpose(image_nchw, (0, 2, 3, 1))
    xp = jnp.pad(x, ((0, 0), (1, 1), (1, 1), (0, 0)))
    xp = xp.astype(jnp.bfloat16).astype(jnp.float32)
    wconv = jnp.asarray(p["w_conv"]).astype(jnp.bfloat16).astype(jnp.float32)
    acc = jnp.zeros((B, H, W, STEM_C), jnp.float32)
    for dy in range(3):
        for dx in range(3):
            acc += jnp.einsum("bhwc,cd->bhwd", xp[:, dy:dy + H, dx:dx + W, :],
                              wconv[dy, dx], precision=hp)
    conv = jnp.maximum(acc + p["b_conv"][0], 0.0)
    feat = conv.mean(axis=(1, 2))
    x1 = jnp.dot(feat, p["w_cnn_fc"], precision=hp) + p["b_cnn_fc"]

    xcat = jnp.concatenate([x1, data], axis=1)
    w1 = jnp.concatenate([p["w1a"], p["w1b"]], axis=0)
    h = jnp.dot(xcat, w1, precision=hp) + p["b1"]
    mu = h.mean(0, keepdims=True)
    var = ((h - mu) ** 2).mean(0, keepdims=True)
    h = jnp.maximum((h - mu) / jnp.sqrt(var + BN_EPS) * p["g1"] + p["be1"], 0.0)
    h2 = jnp.dot(h, p["w2"], precision=hp) + p["b2"]
    mu2 = h2.mean(0, keepdims=True)
    var2 = ((h2 - mu2) ** 2).mean(0, keepdims=True)
    h2 = jnp.maximum((h2 - mu2) / jnp.sqrt(var2 + BN_EPS) * p["g2"] + p["be2"], 0.0)
    return jnp.dot(h2, p["w3"], precision=hp) + p["b3"]


if __name__ == "__main__":
    params = init_params(jax.random.PRNGKey(42))
    kparams = pack_kernel_params(params)

    key = jax.random.PRNGKey(0)
    k_img, k_dat = jax.random.split(key)
    image = jax.random.normal(k_img, (BATCH, CIN, H, W), jnp.float32)   # NCHW
    data = jax.random.normal(k_dat, (BATCH, AUG_IN), jnp.float32)

    out = state_vision_forward(image, data, kparams)
    out = jax.block_until_ready(out)

    ref = reference_forward(image, data, params)
    assert out.shape == (BATCH, MODEL_OUT), out.shape
    assert bool(jnp.allclose(out, ref, rtol=5e-3, atol=5e-3)), (out, ref)

    print("KERNEL_OK")
</pallas_src>

<mosaic_0001>
module attributes {stable_mosaic.version = 11 : i64} {
  func.func @fused_kernel(%arg0: memref<32x162xbf16, #tpu.memory_space<vmem>>, %arg1: memref<2x40xf32, #tpu.memory_space<vmem>>, %arg2: memref<162x256xbf16, #tpu.memory_space<vmem>>, %arg3: memref<256x40xf32, #tpu.memory_space<vmem>>, %arg4: memref<40x180xf32, #tpu.memory_space<vmem>>, %arg5: memref<180x50xf32, #tpu.memory_space<vmem>>, %arg6: memref<50x4xf32, #tpu.memory_space<vmem>>, %arg7: memref<16x256xf32, #tpu.memory_space<vmem>>, %arg8: memref<2x4xf32, #tpu.memory_space<vmem>>) attributes {dimension_semantics = [], scalar_prefetch = 0 : i64, scratch_operands = 0 : i64, tpu.core_type = #tpu.core_type<tc>} {
    %c0 = arith.constant 0 : index
    %c0_0 = arith.constant 0 : index
    %0 = vector.load %arg0[%c0, %c0_0] : memref<32x162xbf16, #tpu.memory_space<vmem>>, vector<32x162xbf16>
    %c0_1 = arith.constant 0 : index
    %c0_2 = arith.constant 0 : index
    %1 = vector.load %arg2[%c0_1, %c0_2] : memref<162x256xbf16, #tpu.memory_space<vmem>>, vector<162x256xbf16>
    %cst = arith.constant dense<0.000000e+00> : vector<32x256xf32>
    %2 = tpu.matmul %0, %1, %cst {dimension_numbers = #tpu.dot_dimension_numbers<[1], [0], [0], [1], [0, 0, 1, 1], [], []>} : vector<32x162xbf16>, vector<162x256xbf16>, vector<32x256xf32> -> vector<32x256xf32>
    %c0_3 = arith.constant 0 : index
    %c0_4 = arith.constant 0 : index
    %3 = vector.load %arg7[%c0_3, %c0_4] : memref<16x256xf32, #tpu.memory_space<vmem>>, vector<1x256xf32>
    %4 = vector.broadcast %3 : vector<1x256xf32> to vector<32x256xf32>
    %5 = arith.addf %2, %4 : vector<32x256xf32>
    %cst_5 = arith.constant 0.000000e+00 : f32
    %6 = vector.broadcast %cst_5 : f32 to vector<32x256xf32>
    %7 = arith.maximumf %5, %6 : vector<32x256xf32>
    %8 = vector.shape_cast %7 : vector<32x256xf32> to vector<2x16x256xf32>
    %cst_6 = arith.constant dense<0.000000e+00> : vector<2x256xf32>
    %9 = vector.multi_reduction <add>, %8, %cst_6 [1] : vector<2x16x256xf32> to vector<2x256xf32>
    %c0_7 = arith.constant 0 : index
    %c0_8 = arith.constant 0 : index
    %10 = vector.load %arg3[%c0_7, %c0_8] : memref<256x40xf32, #tpu.memory_space<vmem>>, vector<256x40xf32>
    %cst_9 = arith.constant dense<0.000000e+00> : vector<2x40xf32>
    %11 = tpu.matmul %9, %10, %cst_9 {dimension_numbers = #tpu.dot_dimension_numbers<[1], [0], [0], [1], [0, 0, 1, 1], [], []>} : vector<2x256xf32>, vector<256x40xf32>, vector<2x40xf32> -> vector<2x40xf32>
    %c1 = arith.constant 1 : index
    %c0_10 = arith.constant 0 : index
    %12 = vector.load %arg7[%c1, %c0_10] : memref<16x256xf32, #tpu.memory_space<vmem>>, vector<1x40xf32>
    %13 = vector.broadcast %12 : vector<1x40xf32> to vector<2x40xf32>
    %14 = arith.addf %11, %13 : vector<2x40xf32>
    %c0_11 = arith.constant 0 : index
    %c0_12 = arith.constant 0 : index
    %15 = vector.load %arg1[%c0_11, %c0_12] : memref<2x40xf32, #tpu.memory_space<vmem>>, vector<2x40xf32>
    %16 = arith.addf %14, %15 : vector<2x40xf32>
    %c0_13 = arith.constant 0 : index
    %c0_14 = arith.constant 0 : index
    %17 = vector.load %arg4[%c0_13, %c0_14] : memref<40x180xf32, #tpu.memory_space<vmem>>, vector<40x180xf32>
    %cst_15 = arith.constant dense<0.000000e+00> : vector<2x180xf32>
    %18 = tpu.matmul %16, %17, %cst_15 {dimension_numbers = #tpu.dot_dimension_numbers<[1], [0], [0], [1], [0, 0, 1, 1], [], []>} : vector<2x40xf32>, vector<40x180xf32>, vector<2x180xf32> -> vector<2x180xf32>
    %c2 = arith.constant 2 : index
    %c0_16 = arith.constant 0 : index
    %19 = vector.load %arg7[%c2, %c0_16] : memref<16x256xf32, #tpu.memory_space<vmem>>, vector<1x180xf32>
    %20 = vector.broadcast %19 : vector<1x180xf32> to vector<2x180xf32>
    %21 = arith.addf %18, %20 : vector<2x180xf32>
    %cst_17 = arith.constant dense<0.000000e+00> : vector<180xf32>
    %22 = vector.multi_reduction <add>, %21, %cst_17 [0] : vector<2x180xf32> to vector<180xf32>
    %23 = vector.shape_cast %22 : vector<180xf32> to vector<1x180xf32>
    %cst_18 = arith.constant 2.000000e+00 : f32
    %24 = vector.broadcast %cst_18 : f32 to vector<1x180xf32>
    %25 = arith.divf %23, %24 : vector<1x180xf32>
    %26 = vector.broadcast %25 : vector<1x180xf32> to vector<2x180xf32>
    %27 = arith.subf %21, %26 : vector<2x180xf32>
    %28 = arith.mulf %27, %27 : vector<2x180xf32>
    %cst_19 = arith.constant dense<0.000000e+00> : vector<180xf32>
    %29 = vector.multi_reduction <add>, %28, %cst_19 [0] : vector<2x180xf32> to vector<180xf32>
    %30 = vector.shape_cast %29 : vector<180xf32> to vector<1x180xf32>
    %cst_20 = arith.constant 2.000000e+00 : f32
    %31 = vector.broadcast %cst_20 : f32 to vector<1x180xf32>
    %32 = arith.divf %30, %31 : vector<1x180xf32>
    %33 = vector.broadcast %25 : vector<1x180xf32> to vector<2x180xf32>
    %34 = arith.subf %21, %33 : vector<2x180xf32>
    %cst_21 = arith.constant 9.99999974E-6 : f32
    %35 = vector.broadcast %cst_21 : f32 to vector<1x180xf32>
    %36 = arith.addf %32, %35 : vector<1x180xf32>
    %37 = math.rsqrt %36 : vector<1x180xf32>
    %38 = vector.broadcast %37 : vector<1x180xf32> to vector<2x180xf32>
    %39 = arith.mulf %34, %38 : vector<2x180xf32>
    %c3 = arith.constant 3 : index
    %c0_22 = arith.constant 0 : index
    %40 = vector.load %arg7[%c3, %c0_22] : memref<16x256xf32, #tpu.memory_space<vmem>>, vector<1x180xf32>
    %41 = vector.broadcast %40 : vector<1x180xf32> to vector<2x180xf32>
    %42 = arith.mulf %39, %41 : vector<2x180xf32>
    %c4 = arith.constant 4 : index
    %c0_23 = arith.constant 0 : index
    %43 = vector.load %arg7[%c4, %c0_23] : memref<16x256xf32, #tpu.memory_space<vmem>>, vector<1x180xf32>
    %44 = vector.broadcast %43 : vector<1x180xf32> to vector<2x180xf32>
    %45 = arith.addf %42, %44 : vector<2x180xf32>
    %cst_24 = arith.constant 0.000000e+00 : f32
    %46 = vector.broadcast %cst_24 : f32 to vector<2x180xf32>
    %47 = arith.maximumf %45, %46 : vector<2x180xf32>
    %c0_25 = arith.constant 0 : index
    %c0_26 = arith.constant 0 : index
    %48 = vector.load %arg5[%c0_25, %c0_26] : memref<180x50xf32, #tpu.memory_space<vmem>>, vector<180x50xf32>
    %cst_27 = arith.constant dense<0.000000e+00> : vector<2x50xf32>
    %49 = tpu.matmul %47, %48, %cst_27 {dimension_numbers = #tpu.dot_dimension_numbers<[1], [0], [0], [1], [0, 0, 1, 1], [], []>} : vector<2x180xf32>, vector<180x50xf32>, vector<2x50xf32> -> vector<2x50xf32>
    %c5 = arith.constant 5 : index
    %c0_28 = arith.constant 0 : index
    %50 = vector.load %arg7[%c5, %c0_28] : memref<16x256xf32, #tpu.memory_space<vmem>>, vector<1x50xf32>
    %51 = vector.broadcast %50 : vector<1x50xf32> to vector<2x50xf32>
    %52 = arith.addf %49, %51 : vector<2x50xf32>
    %cst_29 = arith.constant dense<0.000000e+00> : vector<50xf32>
    %53 = vector.multi_reduction <add>, %52, %cst_29 [0] : vector<2x50xf32> to vector<50xf32>
    %54 = vector.shape_cast %53 : vector<50xf32> to vector<1x50xf32>
    %cst_30 = arith.constant 2.000000e+00 : f32
    %55 = vector.broadcast %cst_30 : f32 to vector<1x50xf32>
    %56 = arith.divf %54, %55 : vector<1x50xf32>
    %57 = vector.broadcast %56 : vector<1x50xf32> to vector<2x50xf32>
    %58 = arith.subf %52, %57 : vector<2x50xf32>
    %59 = arith.mulf %58, %58 : vector<2x50xf32>
    %cst_31 = arith.constant dense<0.000000e+00> : vector<50xf32>
    %60 = vector.multi_reduction <add>, %59, %cst_31 [0] : vector<2x50xf32> to vector<50xf32>
    %61 = vector.shape_cast %60 : vector<50xf32> to vector<1x50xf32>
    %cst_32 = arith.constant 2.000000e+00 : f32
    %62 = vector.broadcast %cst_32 : f32 to vector<1x50xf32>
    %63 = arith.divf %61, %62 : vector<1x50xf32>
    %64 = vector.broadcast %56 : vector<1x50xf32> to vector<2x50xf32>
    %65 = arith.subf %52, %64 : vector<2x50xf32>
    %cst_33 = arith.constant 9.99999974E-6 : f32
    %66 = vector.broadcast %cst_33 : f32 to vector<1x50xf32>
    %67 = arith.addf %63, %66 : vector<1x50xf32>
    %68 = math.rsqrt %67 : vector<1x50xf32>
    %69 = vector.broadcast %68 : vector<1x50xf32> to vector<2x50xf32>
    %70 = arith.mulf %65, %69 : vector<2x50xf32>
    %c6 = arith.constant 6 : index
    %c0_34 = arith.constant 0 : index
    %71 = vector.load %arg7[%c6, %c0_34] : memref<16x256xf32, #tpu.memory_space<vmem>>, vector<1x50xf32>
    %72 = vector.broadcast %71 : vector<1x50xf32> to vector<2x50xf32>
    %73 = arith.mulf %70, %72 : vector<2x50xf32>
    %c7 = arith.constant 7 : index
    %c0_35 = arith.constant 0 : index
    %74 = vector.load %arg7[%c7, %c0_35] : memref<16x256xf32, #tpu.memory_space<vmem>>, vector<1x50xf32>
    %75 = vector.broadcast %74 : vector<1x50xf32> to vector<2x50xf32>
    %76 = arith.addf %73, %75 : vector<2x50xf32>
    %cst_36 = arith.constant 0.000000e+00 : f32
    %77 = vector.broadcast %cst_36 : f32 to vector<2x50xf32>
    %78 = arith.maximumf %76, %77 : vector<2x50xf32>
    %c0_37 = arith.constant 0 : index
    %c0_38 = arith.constant 0 : index
    %79 = vector.load %arg6[%c0_37, %c0_38] : memref<50x4xf32, #tpu.memory_space<vmem>>, vector<50x4xf32>
    %cst_39 = arith.constant dense<0.000000e+00> : vector<2x4xf32>
    %80 = tpu.matmul %78, %79, %cst_39 {dimension_numbers = #tpu.dot_dimension_numbers<[1], [0], [0], [1], [0, 0, 1, 1], [], []>} : vector<2x50xf32>, vector<50x4xf32>, vector<2x4xf32> -> vector<2x4xf32>
    %c8 = arith.constant 8 : index
    %c0_40 = arith.constant 0 : index
    %81 = vector.load %arg7[%c8, %c0_40] : memref<16x256xf32, #tpu.memory_space<vmem>>, vector<1x4xf32>
    %82 = vector.broadcast %81 : vector<1x4xf32> to vector<2x4xf32>
    %83 = arith.addf %80, %82 : vector<2x4xf32>
    %c0_41 = arith.constant 0 : index
    %c0_42 = arith.constant 0 : index
    %84 = vector.load %arg8[%c0_41, %c0_42] : memref<2x4xf32, #tpu.memory_space<vmem>>, vector<2x4xf32>
    tpu.vector_store %arg8[%c0_41, %c0_42], %83 {strides = array<i32>} : memref<2x4xf32, #tpu.memory_space<vmem>>, vector<2x4xf32>,
    return
  }
}

</mosaic_0001>

<llo_original>
// kernel: state_vision_forward.1
$region0: #{state_vision_forward.1}
  #allocation0 [shape = 'u32[]', space=smem, size = 0x4, offset = 0x4, fixed_abs, tag = 'smem constant byte address 0x4 - core index']
  #allocation1 [shape = 'u32[72,128]{1,0:T(1,128)}', space=vmem, size = 0x9000, scoped, tag = 'internal scratch']
  %s0 = inlined_call_operand.vmem [shape: bf16[32,162], index: 0, kind: input, shape index: {}]
  %s1 = inlined_call_operand.vmem [shape: f32[2,40], index: 1, kind: input, shape index: {}]
  %s2 = inlined_call_operand.vmem [shape: bf16[162,256], index: 2, kind: input, shape index: {}]
  %s3 = inlined_call_operand.vmem [shape: f32[256,40], index: 3, kind: input, shape index: {}]
  %s4 = inlined_call_operand.vmem [shape: f32[40,180], index: 4, kind: input, shape index: {}]
  %s5 = inlined_call_operand.vmem [shape: f32[180,50], index: 5, kind: input, shape index: {}]
  %s6 = inlined_call_operand.vmem [shape: f32[50,4], index: 6, kind: input, shape index: {}]
  %s7 = inlined_call_operand.vmem [shape: f32[16,256], index: 7, kind: input, shape index: {}]
  %s8 = inlined_call_operand.hbm [shape: f32[2,4], index: 8, kind: output, shape index: {}]
  %s9 = sld [smem:[#allocation0]]
  $region42: #{state_vision_forward.1} parent=0
    _
  %s11 = ssub.s32 1, %s9
  %s12 = scalar_select 0, %s11, %s9
  $region1: #{state_vision_forward.1} parent=0
    #allocation2 [shape = 'u8[1024]{0}', space=vmem, size = 0x400, scoped, tag = 'output window, operand 0, single buffered']
    #allocation3 [shape = 's32[1]{0}', space=sflag, size = 0x4, scoped, tag = 'scoped memory for state_vision_forward.1']
    %13 = vsyncpa [#allocation3], 0
    // Predicated region
    $region2: #{state_vision_forward.1} parent=1 // pred_check
      _
    $region3: #{state_vision_forward.1} parent=1 // pred_check_branch
      %15 = sbr.rel (0) target = $region5
    $region4: #{state_vision_forward.1} parent=1 // pred_region
      _
    $region5: #{state_vision_forward.1} parent=1 // pred_fallthru
      _
    // Predicated region
    $region6: #{state_vision_forward.1} parent=1 // pred_check
      _
    $region7: #{state_vision_forward.1} parent=1 // pred_check_branch
      %17 = sbr.rel (0) target = $region9
    $region8: #{state_vision_forward.1} parent=1 // pred_region
      _
    $region9: #{state_vision_forward.1} parent=1 // pred_fallthru
      _
    // Predicated region
    $region10: #{state_vision_forward.1} parent=1 // pred_check
      _
    $region11: #{state_vision_forward.1} parent=1 // pred_check_branch
      %19 = sbr.rel (0) target = $region13
    $region12: #{state_vision_forward.1} parent=1 // pred_region
      _
    $region13: #{state_vision_forward.1} parent=1 // pred_fallthru
      _
    // Predicated region
    $region14: #{state_vision_forward.1} parent=1 // pred_check
      _
    $region15: #{state_vision_forward.1} parent=1 // pred_check_branch
      %21 = sbr.rel (0) target = $region17
    $region16: #{state_vision_forward.1} parent=1 // pred_region
      _
    $region17: #{state_vision_forward.1} parent=1 // pred_fallthru
      _
    // Predicated region
    $region18: #{state_vision_forward.1} parent=1 // pred_check
      _
    $region19: #{state_vision_forward.1} parent=1 // pred_check_branch
      %23 = sbr.rel (0) target = $region21
    $region20: #{state_vision_forward.1} parent=1 // pred_region
      _
    $region21: #{state_vision_forward.1} parent=1 // pred_fallthru
      _
    // Predicated region
    $region22: #{state_vision_forward.1} parent=1 // pred_check
      _
    $region23: #{state_vision_forward.1} parent=1 // pred_check_branch
      %25 = sbr.rel (0) target = $region25
    $region24: #{state_vision_forward.1} parent=1 // pred_region
      _
    $region25: #{state_vision_forward.1} parent=1 // pred_fallthru
      _
    // Predicated region
    $region26: #{state_vision_forward.1} parent=1 // pred_check
      _
    $region27: #{state_vision_forward.1} parent=1 // pred_check_branch
      %27 = sbr.rel (0) target = $region29
    $region28: #{state_vision_forward.1} parent=1 // pred_region
      _
    $region29: #{state_vision_forward.1} parent=1 // pred_fallthru
      _
    // Predicated region
    $region30: #{state_vision_forward.1} parent=1 // pred_check
      _
    $region31: #{state_vision_forward.1} parent=1 // pred_check_branch
      %29 = sbr.rel (0) target = $region33
    $region32: #{state_vision_forward.1} parent=1 // pred_region
      _
    $region33: #{state_vision_forward.1} parent=1 // pred_fallthru
      _
    %v31 = vld [vmem:[%s0] sm:$0xff]
    %v32 = vld [vmem:[%s0 + $0x8] sm:$0xff]
    %v33 = vld [vmem:[%s0 + $0x10] sm:$0xff]
    %v34 = vld [vmem:[%s0 + $0x18] sm:$0xff]
    %v35 = vld [vmem:[%s2] sm:$0xff]
    %v36 = vld [vmem:[%s2 + $0x8] sm:$0xff]
    %v37 = vld [vmem:[%s2 + $0x10] sm:$0xff]
    %v38 = vld [vmem:[%s2 + $0x18] sm:$0xff]
    %v39 = vld [vmem:[%s2 + $0x20] sm:$0xff]
    %v40 = vld [vmem:[%s2 + $0x28] sm:$0xff]
    %v41 = vld [vmem:[%s2 + $0x30] sm:$0xff]
    %v42 = vld [vmem:[%s2 + $0x38] sm:$0xff]
    %v43 = vld [vmem:[%s2 + $0x40] sm:$0xff]
    %v44 = vld [vmem:[%s2 + $0x48] sm:$0xff]
    %v45 = vld [vmem:[%s2 + $0x50] sm:$0xff]
    %v46 = vld [vmem:[%s2 + $0x58] sm:$0xff]
    %v47 = vld [vmem:[%s2 + $0x60] sm:$0xff]
    %v48 = vld [vmem:[%s2 + $0x68] sm:$0xff]
    %v49 = vld [vmem:[%s2 + $0x70] sm:$0xff]
    %v50 = vld [vmem:[%s2 + $0x78] sm:$0xff]
    %v51 = vld [vmem:[%s2 + $0x80] sm:$0xff]
    %v52 = vld [vmem:[%s2 + $0x88] sm:$0xff]
    %v53 = vld [vmem:[%s2 + $0x90] sm:$0xff]
    %v54 = vld [vmem:[%s2 + $0x98] sm:$0xff]
    %v55 = vld [vmem:[%s2 + $0xa0] sm:$0x11]
    %v56 = vld [vmem:[%s7] ss:$8 sm:$0x3]
    %v58 = vperm.slane %v56, 0
    %v59 = vperm.slane %v56, 1
    %v66 = vunpack.c.l.b16 %v31
    %v67 = vunpack.c.h.b16 %v31
    %v68 = vunpack.c.l.b16 %v32
    %v69 = vunpack.c.h.b16 %v32
    %v70 = vunpack.c.l.b16 %v33
    %v71 = vunpack.c.h.b16 %v33
    %v72 = vunpack.c.l.b16 %v34
    %v73 = vunpack.c.h.b16 %v34
    %v74 = vpack.c.b16 %v68, %v66
    %v75 = vpack.c.b16 %v69, %v67
    %v76 = vpack.c.b16 %v72, %v70
    %v77 = vpack.c.b16 %v73, %v71
    %v101 = vunpack.c.l.b16 %v35
    %v102 = vunpack.c.h.b16 %v35
    %v103 = vunpack.c.l.b16 %v36
    %v104 = vunpack.c.h.b16 %v36
    %v105 = vunpack.c.l.b16 %v37
    %v106 = vunpack.c.h.b16 %v37
    %v107 = vunpack.c.l.b16 %v38
    %v108 = vunpack.c.h.b16 %v38
    %v109 = vunpack.c.l.b16 %v39
    %v110 = vunpack.c.h.b16 %v39
    %v111 = vunpack.c.l.b16 %v40
    %v112 = vunpack.c.h.b16 %v40
    %v113 = vunpack.c.l.b16 %v41
    %v114 = vunpack.c.h.b16 %v41
    %v115 = vunpack.c.l.b16 %v42
    %v116 = vunpack.c.h.b16 %v42
    %v117 = vunpack.c.l.b16 %v43
    %v118 = vunpack.c.h.b16 %v43
    %v119 = vunpack.c.l.b16 %v44
    %v120 = vunpack.c.h.b16 %v44
    %v121 = vunpack.c.l.b16 %v45
    %v122 = vunpack.c.h.b16 %v45
    %v123 = vunpack.c.l.b16 %v46
    %v124 = vunpack.c.h.b16 %v46
    %v125 = vunpack.c.l.b16 %v47
    %v126 = vunpack.c.h.b16 %v47
    %v127 = vunpack.c.l.b16 %v48
    %v128 = vunpack.c.h.b16 %v48
    %v129 = vunpack.c.l.b16 %v49
    %v130 = vunpack.c.h.b16 %v49
    %v131 = vunpack.c.l.b16 %v50
    %v132 = vunpack.c.h.b16 %v50
    %v133 = vunpack.c.l.b16 %v51
    %v134 = vunpack.c.h.b16 %v51
    %v135 = vunpack.c.l.b16 %v52
    %v136 = vunpack.c.h.b16 %v52
    %v137 = vunpack.c.l.b16 %v53
    %v138 = vunpack.c.h.b16 %v53
    %v139 = vunpack.c.l.b16 %v54
    %v140 = vunpack.c.h.b16 %v54
    %v141 = vunpack.c.l.b16 %v55
    %v142 = vunpack.c.h.b16 %v55
    %v143 = vpack.c.b16 %v103, %v101
    %v144 = vpack.c.b16 %v104, %v102
    %v145 = vpack.c.b16 %v107, %v105
    %v146 = vpack.c.b16 %v108, %v106
    %v147 = vpack.c.b16 %v111, %v109
    %v148 = vpack.c.b16 %v112, %v110
    %v149 = vpack.c.b16 %v115, %v113
    %v150 = vpack.c.b16 %v116, %v114
    %v151 = vpack.c.b16 %v119, %v117
    %v152 = vpack.c.b16 %v120, %v118
    %v153 = vpack.c.b16 %v123, %v121
    %v154 = vpack.c.b16 %v124, %v122
    %v155 = vpack.c.b16 %v127, %v125
    %v156 = vpack.c.b16 %v128, %v126
    %v157 = vpack.c.b16 %v131, %v129
    %v158 = vpack.c.b16 %v132, %v130
    %v159 = vpack.c.b16 %v135, %v133
    %v160 = vpack.c.b16 %v136, %v134
    %v161 = vpack.c.b16 %v139, %v137
    %v162 = vpack.c.b16 %v140, %v138
    %v163 = vpack.c.b16 %v141, %v141
    %v164 = vpack.c.b16 %v142, %v142
    %vm185 = vcmask 277504
    %v187 = vsel %vm185, %v75, 0
    %v190 = vsel %vm185, %v77, 0
    %vm192 = vcmask 1040384
    %v194 = vsel %vm192, %v163, 0
    %v197 = vsel %vm192, %v164, 0
    %199 = vmatpush.bf16.msra.mxu0 %v157
    %200 = vmatpush.bf16.msra.mxu0 %v155
    %201 = vmatpush.bf16.msra.mxu0 %v153
    %202 = vmatpush.bf16.msra.mxu0 %v151
    %203 = vmatpush.bf16.msra.mxu0 %v149
    %204 = vmatpush.bf16.msra.mxu0 %v147
    %205 = vmatpush.bf16.msra.mxu0 %v145
    %206 = vmatpush.bf16.msra.mxu0 %v143
    %207 = vmatmul.bf16.gmra.mxu0 %v74
    %v208 = vpop.f32.mrf.mxu0
    %v209 = vadd.f32 %v58, %v208
    %v210 = vpop.f32.mrf.mxu0
    %v211 = vadd.f32 %v58, %v210
    %212 = vmatmul.bf16.gmra.mxu0 %v76
    %v213 = vpop.f32.mrf.mxu0
    %v214 = vadd.f32 %v58, %v213
    %v215 = vpop.f32.mrf.mxu0
    %v216 = vadd.f32 %v58, %v215
    %217 = vdwg.mxu0
    %218 = vmatpush.bf16.msra.mxu0 0
    %219 = vmatpush.bf16.msra.mxu0 0
    %220 = vmatpush.bf16.msra.mxu0 0
    %221 = vmatpush.bf16.msra.mxu0 0
    %222 = vmatpush.bf16.msra.mxu0 0
    %223 = vmatpush.bf16.msra.mxu0 %v194
    %224 = vmatpush.bf16.msra.mxu0 %v161
    %225 = vmatpush.bf16.msra.mxu0 %v159
    %226 = vmatmul.bf16.gmra.mxu0 %v187
    %v227 = vpop.f32.mrf.mxu0
    %v228 = vadd.f32 %v209, %v227
    %v229 = vpop.f32.mrf.mxu0
    %v230 = vadd.f32 %v211, %v229
    %231 = vmatmul.bf16.gmra.mxu0 %v190
    %v232 = vpop.f32.mrf.mxu0
    %v233 = vadd.f32 %v214, %v232
    %v234 = vpop.f32.mrf.mxu0
    %v235 = vadd.f32 %v216, %v234
    %236 = vdwg.mxu0
    %237 = vmatpush.bf16.msra.mxu0 %v158
    %238 = vmatpush.bf16.msra.mxu0 %v156
    %239 = vmatpush.bf16.msra.mxu0 %v154
    %240 = vmatpush.bf16.msra.mxu0 %v152
    %241 = vmatpush.bf16.msra.mxu0 %v150
    %242 = vmatpush.bf16.msra.mxu0 %v148
    %243 = vmatpush.bf16.msra.mxu0 %v146
    %244 = vmatpush.bf16.msra.mxu0 %v144
    %245 = vmatmul.bf16.gmra.mxu0 %v74
    %v246 = vpop.f32.mrf.mxu0
    %v247 = vadd.f32 %v59, %v246
    %v248 = vpop.f32.mrf.mxu0
    %v249 = vadd.f32 %v59, %v248
    %250 = vmatmul.bf16.gmra.mxu0 %v76
    %v251 = vpop.f32.mrf.mxu0
    %v252 = vadd.f32 %v59, %v251
    %v253 = vpop.f32.mrf.mxu0
    %v254 = vadd.f32 %v59, %v253
    %255 = vdwg.mxu0
    %256 = vmatpush.bf16.msra.mxu0 0
    %257 = vmatpush.bf16.msra.mxu0 0
    %258 = vmatpush.bf16.msra.mxu0 0
    %259 = vmatpush.bf16.msra.mxu0 0
    %260 = vmatpush.bf16.msra.mxu0 0
    %261 = vmatpush.bf16.msra.mxu0 %v197
    %262 = vmatpush.bf16.msra.mxu0 %v162
    %263 = vmatpush.bf16.msra.mxu0 %v160
    %264 = vmatmul.bf16.gmra.mxu0 %v187
    %v265 = vpop.f32.mrf.mxu0
    %v266 = vadd.f32 %v247, %v265
    %v267 = vpop.f32.mrf.mxu0
    %v268 = vadd.f32 %v249, %v267
    %269 = vmatmul.bf16.gmra.mxu0 %v190
    %v270 = vpop.f32.mrf.mxu0
    %v271 = vadd.f32 %v252, %v270
    %v272 = vpop.f32.mrf.mxu0
    %v273 = vadd.f32 %v254, %v272
    %274 = vdwg.mxu0
    %v275 = vmax.f32 %v228, 0.0
    %v276 = vmax.f32 %v266, 0.0
    %v277 = vmax.f32 %v230, 0.0
    %v278 = vmax.f32 %v268, 0.0
    %v279 = vmax.f32 %v233, 0.0
    %v280 = vmax.f32 %v271, 0.0
    %v281 = vmax.f32 %v235, 0.0
    %v282 = vmax.f32 %v273, 0.0
    %v283 = vadd.f32 %v275, %v277
    %v284 = vrot.slane %v283, 4
    %v285 = vadd.f32 %v283, %v284
    %v286 = vrot.slane %v285, 2
    %v287 = vadd.f32 %v285, %v286
    %v288 = vrot.slane %v287, 1
    %v289 = vadd.f32 %v287, %v288
    %v290 = vadd.f32 %v276, %v278
    %v291 = vrot.slane %v290, 4
    %v292 = vadd.f32 %v290, %v291
    %v293 = vrot.slane %v292, 2
    %v294 = vadd.f32 %v292, %v293
    %v295 = vrot.slane %v294, 1
    %v296 = vadd.f32 %v294, %v295
    %v297 = vadd.f32 %v279, %v281
    %v298 = vrot.slane %v297, 4
    %v299 = vadd.f32 %v297, %v298
    %v300 = vrot.slane %v299, 2
    %v301 = vadd.f32 %v299, %v300
    %v302 = vrot.slane %v301, 1
    %v303 = vadd.f32 %v301, %v302
    %v304 = vadd.f32 %v280, %v282
    %v305 = vrot.slane %v304, 4
    %v306 = vadd.f32 %v304, %v305
    %v307 = vrot.slane %v306, 2
    %v308 = vadd.f32 %v306, %v307
    %v309 = vrot.slane %v308, 1
    %v310 = vadd.f32 %v308, %v309
    %v311 = vld [vmem:[%s3] sm:$0xff]
    %v312 = vld [vmem:[%s3 + $0x8] sm:$0xff]
    %v313 = vld [vmem:[%s3 + $0x10] sm:$0xff]
    %v314 = vld [vmem:[%s3 + $0x18] sm:$0xff]
    %v315 = vld [vmem:[%s3 + $0x20] sm:$0xff]
    %v316 = vld [vmem:[%s3 + $0x28] sm:$0xff]
    %v317 = vld [vmem:[%s3 + $0x30] sm:$0xff]
    %v318 = vld [vmem:[%s3 + $0x38] sm:$0xff]
    %v319 = vld [vmem:[%s3 + $0x40] sm:$0xff]
    %v320 = vld [vmem:[%s3 + $0x48] sm:$0xff]
    %v321 = vld [vmem:[%s3 + $0x50] sm:$0xff]
    %v322 = vld [vmem:[%s3 + $0x58] sm:$0xff]
    %v323 = vld [vmem:[%s3 + $0x60] sm:$0xff]
    %v324 = vld [vmem:[%s3 + $0x68] sm:$0xff]
    %v325 = vld [vmem:[%s3 + $0x70] sm:$0xff]
    %v326 = vld [vmem:[%s3 + $0x78] sm:$0xff]
    %v327 = vld [vmem:[%s3 + $0x80] sm:$0xff]
    %v328 = vld [vmem:[%s3 + $0x88] sm:$0xff]
    %v329 = vld [vmem:[%s3 + $0x90] sm:$0xff]
    %v330 = vld [vmem:[%s3 + $0x98] sm:$0xff]
    %v331 = vld [vmem:[%s3 + $0xa0] sm:$0xff]
    %v332 = vld [vmem:[%s3 + $0xa8] sm:$0xff]
    %v333 = vld [vmem:[%s3 + $0xb0] sm:$0xff]
    %v334 = vld [vmem:[%s3 + $0xb8] sm:$0xff]
    %v335 = vld [vmem:[%s3 + $0xc0] sm:$0xff]
    %v336 = vld [vmem:[%s3 + $0xc8] sm:$0xff]
    %v337 = vld [vmem:[%s3 + $0xd0] sm:$0xff]
    %v338 = vld [vmem:[%s3 + $0xd8] sm:$0xff]
    %v339 = vld [vmem:[%s3 + $0xe0] sm:$0xff]
    %v340 = vld [vmem:[%s3 + $0xe8] sm:$0xff]
    %v341 = vld [vmem:[%s3 + $0xf0] sm:$0xff]
    %v342 = vld [vmem:[%s3 + $0xf8] sm:$0xff]
    %v343 = vld [vmem:[%s7 + $0x1] ss:$0 sm:$0xff]
    %vm348 = vcmask 1041409
    %v349 = vsel %vm348, %v303, %v289
    %v350 = vsel %vm348, %v310, %v296
    %353 = vmatpush.msra.mxu0 %v326
    %354 = vmatpush.msra.mxu0 %v325
    %355 = vmatpush.msra.mxu0 %v324
    %356 = vmatpush.msra.mxu0 %v323
    %357 = vmatpush.msra.mxu0 %v322
    %358 = vmatpush.msra.mxu0 %v321
    %359 = vmatpush.msra.mxu0 %v320
    %360 = vmatpush.msra.mxu0 %v319
    %361 = vmatpush.msra.mxu0 %v318
    %362 = vmatpush.msra.mxu0 %v317
    %363 = vmatpush.msra.mxu0 %v316
    %364 = vmatpush.msra.mxu0 %v315
    %365 = vmatpush.msra.mxu0 %v314
    %366 = vmatpush.msra.mxu0 %v313
    %367 = vmatpush.msra.mxu0 %v312
    %368 = vmatpush.msra.mxu0 %v311
    %369 = vmatmul.f32.gmra.mxu0 %v349
    %v370 = vpop.f32.mrf.mxu0
    %v371 = vadd.f32 %v343, %v370
    %372 = vdwg.mxu0
    %373 = vmatpush.msra.mxu0 %v342
    %374 = vmatpush.msra.mxu0 %v341
    %375 = vmatpush.msra.mxu0 %v340
    %376 = vmatpush.msra.mxu0 %v339
    %377 = vmatpush.msra.mxu0 %v338
    %378 = vmatpush.msra.mxu0 %v337
    %379 = vmatpush.msra.mxu0 %v336
    %380 = vmatpush.msra.mxu0 %v335
    %381 = vmatpush.msra.mxu0 %v334
    %382 = vmatpush.msra.mxu0 %v333
    %383 = vmatpush.msra.mxu0 %v332
    %384 = vmatpush.msra.mxu0 %v331
    %385 = vmatpush.msra.mxu0 %v330
    %386 = vmatpush.msra.mxu0 %v329
    %387 = vmatpush.msra.mxu0 %v328
    %388 = vmatpush.msra.mxu0 %v327
    %389 = vmatmul.f32.gmra.mxu0 %v350
    %v390 = vpop.f32.mrf.mxu0
    %v391 = vadd.f32 %v371, %v390
    %392 = vdwg.mxu0
    %v393 = vld [vmem:[%s1] sm:$0x3]
    %v394 = vadd.f32 %v391, %v393
    %v395 = vld [vmem:[%s4] sm:$0xff]
    %v396 = vld [vmem:[%s4 + $0x8] sm:$0xff]
    %v397 = vld [vmem:[%s4 + $0x10] sm:$0xff]
    %v398 = vld [vmem:[%s4 + $0x18] sm:$0xff]
    %v399 = vld [vmem:[%s4 + $0x20] sm:$0xff]
    %v400 = vld [vmem:[%s4 + $0x28] sm:$0xff]
    %v401 = vld [vmem:[%s4 + $0x30] sm:$0xff]
    %v402 = vld [vmem:[%s4 + $0x38] sm:$0xff]
    %v403 = vld [vmem:[%s4 + $0x40] sm:$0xff]
    %v404 = vld [vmem:[%s4 + $0x48] sm:$0xff]
    %s405 = scalar_lea.vmem %s7, 2
    %v406 = vld [vmem:[%s405] ss:$8 sm:$0x3]
    %v408 = vperm.slane %v406, 0
    %v409 = vperm.slane %v406, 1
    %vm412 = vcmask 326656
    %v414 = vsel %vm412, %v394, 0
    %416 = vmatpush.msra.mxu0 0.0
    %417 = vmatpush.msra.mxu0 0.0
    %418 = vmatpush.msra.mxu0 0.0
    %419 = vmatpush.msra.mxu0 0.0
    %420 = vmatpush.msra.mxu0 0.0
    %421 = vmatpush.msra.mxu0 0.0
    %422 = vmatpush.msra.mxu0 0.0
    %423 = vmatpush.msra.mxu0 0.0
    %424 = vmatpush.msra.mxu0 0.0
    %425 = vmatpush.msra.mxu0 0.0
    %426 = vmatpush.msra.mxu0 0.0
    %427 = vmatpush.msra.mxu0 %v403
    %428 = vmatpush.msra.mxu0 %v401
    %429 = vmatpush.msra.mxu0 %v399
    %430 = vmatpush.msra.mxu0 %v397
    %431 = vmatpush.msra.mxu0 %v395
    %432 = vmatmul.f32.gmra.mxu0 %v414
    %v433 = vpop.f32.mrf.mxu0
    %v434 = vadd.f32 %v408, %v433
    %435 = vdwg.mxu0
    %436 = vmatpush.msra.mxu0 0.0
    %437 = vmatpush.msra.mxu0 0.0
    %438 = vmatpush.msra.mxu0 0.0
    %439 = vmatpush.msra.mxu0 0.0
    %440 = vmatpush.msra.mxu0 0.0
    %441 = vmatpush.msra.mxu0 0.0
    %442 = vmatpush.msra.mxu0 0.0
    %443 = vmatpush.msra.mxu0 0.0
    %444 = vmatpush.msra.mxu0 0.0
    %445 = vmatpush.msra.mxu0 0.0
    %446 = vmatpush.msra.mxu0 0.0
    %447 = vmatpush.msra.mxu0 %v404
    %448 = vmatpush.msra.mxu0 %v402
    %449 = vmatpush.msra.mxu0 %v400
    %450 = vmatpush.msra.mxu0 %v398
    %451 = vmatpush.msra.mxu0 %v396
    %452 = vmatmul.f32.gmra.mxu0 %v414
    %v453 = vpop.f32.mrf.mxu0
    %v454 = vadd.f32 %v409, %v453
    %455 = vdwg.mxu0
    %vm456 = vcmask 1041408
    %v457 = vsel %vm456, %v434, 0.0
    %v458 = vrot.slane %v457, 4
    %v459 = vadd.f32 %v457, %v458
    %v460 = vrot.slane %v459, 2
    %v461 = vadd.f32 %v459, %v460
    %v462 = vrot.slane %v461, 1
    %v463 = vadd.f32 %v461, %v462
    %vm464 = vcmask 418816
    %v465 = vsel %vm464, %v454, 0.0
    %v466 = vrot.slane %v465, 4
    %v467 = vadd.f32 %v465, %v466
    %v468 = vrot.slane %v467, 2
    %v469 = vadd.f32 %v467, %v468
    %v470 = vrot.slane %v469, 1
    %v471 = vadd.f32 %v469, %v470
    %v472 = vrcp.pop 2.0
    %v473 = vmul.f32 2.0, %v472
    %v474 = vsub.f32 1.0, %v473
    %v475 = vmul.f32 %v472, %v474
    %v476 = vadd.f32 %v472, %v475
    %vm477 = vweird.f32 %v472
    %v478 = vsel %vm477, %v472, %v476
    %v479 = vmul.f32 %v463, %v478
    %v480 = vmul.f32 %v471, %v478
    %v481 = vsub.f32 %v434, %v479
    %v482 = vsub.f32 %v454, %v480
    %v483 = vmul.f32 %v481, %v481
    %v484 = vmul.f32 %v482, %v482
    %v485 = vsel %vm456, %v483, 0.0
    %v486 = vrot.slane %v485, 4
    %v487 = vadd.f32 %v485, %v486
    %v488 = vrot.slane %v487, 2
    %v489 = vadd.f32 %v487, %v488
    %v490 = vrot.slane %v489, 1
    %v491 = vadd.f32 %v489, %v490
    %v492 = vsel %vm464, %v484, 0.0
    %v493 = vrot.slane %v492, 4
    %v494 = vadd.f32 %v492, %v493
    %v495 = vrot.slane %v494, 2
    %v496 = vadd.f32 %v494, %v495
    %v497 = vrot.slane %v496, 1
    %v498 = vadd.f32 %v496, %v497
    %v499 = vmul.f32 %v491, %v478
    %v500 = vmul.f32 %v498, %v478
    %v501 = vadd.f32 %v499, 1e-05
    %v502 = vadd.f32 %v500, 1e-05
    %v503 = vrsqrt.pop %v501
    %v504 = vmul.f32 %v503, %v501
    %v505 = vmul.f32 %v504, %v503
    %v506 = vmul.f32 0.5, %v505
    %v507 = vsub.f32 1.5, %v506
    %v508 = vmul.f32 %v503, %v507
    %vm509 = vweird.f32 %v501
    %vm510 = vweird.f32 %v503
    %vm511 = vmor %vm509, %vm510
    %v512 = vsel %vm511, %v503, %v508
    %v513 = vrsqrt.pop %v502
    %v514 = vmul.f32 %v513, %v502
    %v515 = vmul.f32 %v514, %v513
    %v516 = vmul.f32 0.5, %v515
    %v517 = vsub.f32 1.5, %v516
    %v518 = vmul.f32 %v513, %v517
    %vm519 = vweird.f32 %v502
    %vm520 = vweird.f32 %v513
    %vm521 = vmor %vm519, %vm520
    %v522 = vsel %vm521, %v513, %v518
    %v523 = vmul.f32 %v481, %v512
    %v524 = vmul.f32 %v482, %v522
    %s525 = scalar_lea.vmem %s7, 3
    %v526 = vld [vmem:[%s525] ss:$8 sm:$0x3]
    %v528 = vperm.slane %v526, 0
    %v529 = vperm.slane %v526, 1
    %v532 = vmul.f32 %v523, %v528
    %v533 = vmul.f32 %v524, %v529
    %s534 = scalar_lea.vmem %s7, 4
    %v535 = vld [vmem:[%s534] ss:$8 sm:$0x3]
    %v537 = vperm.slane %v535, 0
    %v538 = vperm.slane %v535, 1
    %v541 = vadd.f32 %v532, %v537
    %v542 = vadd.f32 %v533, %v538
    %v543 = vmax.f32 %v541, 0.0
    %v544 = vmax.f32 %v542, 0.0
    %v545 = vld [vmem:[%s5] sm:$0xff]
    %v546 = vld [vmem:[%s5 + $0x8] sm:$0xff]
    %v547 = vld [vmem:[%s5 + $0x10] sm:$0xff]
    %v548 = vld [vmem:[%s5 + $0x18] sm:$0xff]
    %v549 = vld [vmem:[%s5 + $0x20] sm:$0xff]
    %v550 = vld [vmem:[%s5 + $0x28] sm:$0xff]
    %v551 = vld [vmem:[%s5 + $0x30] sm:$0xff]
    %v552 = vld [vmem:[%s5 + $0x38] sm:$0xff]
    %v553 = vld [vmem:[%s5 + $0x40] sm:$0xff]
    %v554 = vld [vmem:[%s5 + $0x48] sm:$0xff]
    %v555 = vld [vmem:[%s5 + $0x50] sm:$0xff]
    %v556 = vld [vmem:[%s5 + $0x58] sm:$0xff]
    %v557 = vld [vmem:[%s5 + $0x60] sm:$0xff]
    %v558 = vld [vmem:[%s5 + $0x68] sm:$0xff]
    %v559 = vld [vmem:[%s5 + $0x70] sm:$0xff]
    %v560 = vld [vmem:[%s5 + $0x78] sm:$0xff]
    %v561 = vld [vmem:[%s5 + $0x80] sm:$0xff]
    %v562 = vld [vmem:[%s5 + $0x88] sm:$0xff]
    %v563 = vld [vmem:[%s5 + $0x90] sm:$0xff]
    %v564 = vld [vmem:[%s5 + $0x98] sm:$0xff]
    %v565 = vld [vmem:[%s5 + $0xa0] sm:$0xff]
    %v566 = vld [vmem:[%s5 + $0xa8] sm:$0xff]
    %v567 = vld [vmem:[%s5 + $0xb0] sm:$0xf]
    %v568 = vld [vmem:[%s7 + $0x5] ss:$0 sm:$0xff]
    %vm569 = vcmask 424960
    %v571 = vsel %vm569, %v544, 0
    %vm573 = vcmask 1043456
    %v575 = vsel %vm573, %v567, 0
    %577 = vmatpush.msra.mxu0 %v560
    %578 = vmatpush.msra.mxu0 %v559
    %579 = vmatpush.msra.mxu0 %v558
    %580 = vmatpush.msra.mxu0 %v557
    %581 = vmatpush.msra.mxu0 %v556
    %582 = vmatpush.msra.mxu0 %v555
    %583 = vmatpush.msra.mxu0 %v554
    %584 = vmatpush.msra.mxu0 %v553
    %585 = vmatpush.msra.mxu0 %v552
    %586 = vmatpush.msra.mxu0 %v551
    %587 = vmatpush.msra.mxu0 %v550
    %588 = vmatpush.msra.mxu0 %v549
    %589 = vmatpush.msra.mxu0 %v548
    %590 = vmatpush.msra.mxu0 %v547
    %591 = vmatpush.msra.mxu0 %v546
    %592 = vmatpush.msra.mxu0 %v545
    %593 = vmatmul.f32.gmra.mxu0 %v543
    %v594 = vpop.f32.mrf.mxu0
    %v595 = vadd.f32 %v568, %v594
    %596 = vdwg.mxu0
    %597 = vmatpush.msra.mxu0 0.0
    %598 = vmatpush.msra.mxu0 0.0
    %599 = vmatpush.msra.mxu0 0.0
    %600 = vmatpush.msra.mxu0 0.0
    %601 = vmatpush.msra.mxu0 0.0
    %602 = vmatpush.msra.mxu0 0.0
    %603 = vmatpush.msra.mxu0 0.0
    %604 = vmatpush.msra.mxu0 0.0
    %605 = vmatpush.msra.mxu0 0.0
    %606 = vmatpush.msra.mxu0 %v575
    %607 = vmatpush.msra.mxu0 %v566
    %608 = vmatpush.msra.mxu0 %v565
    %609 = vmatpush.msra.mxu0 %v564
    %610 = vmatpush.msra.mxu0 %v563
    %611 = vmatpush.msra.mxu0 %v562
    %612 = vmatpush.msra.mxu0 %v561
    %613 = vmatmul.f32.gmra.mxu0 %v571
    %v614 = vpop.f32.mrf.mxu0
    %v615 = vadd.f32 %v595, %v614
    %616 = vdwg.mxu0
    %vm617 = vcmask 402432
    %v618 = vsel %vm617, %v615, 0.0
    %v619 = vrot.slane %v618, 4
    %v620 = vadd.f32 %v618, %v619
    %v621 = vrot.slane %v620, 2
    %v622 = vadd.f32 %v620, %v621
    %v623 = vrot.slane %v622, 1
    %v624 = vadd.f32 %v622, %v623
    %v625 = vmul.f32 %v624, %v478
    %v626 = vsub.f32 %v615, %v625
    %v627 = vmul.f32 %v626, %v626
    %v628 = vsel %vm617, %v627, 0.0
    %v629 = vrot.slane %v628, 4
    %v630 = vadd.f32 %v628, %v629
    %v631 = vrot.slane %v630, 2
    %v632 = vadd.f32 %v630, %v631
    %v633 = vrot.slane %v632, 1
    %v634 = vadd.f32 %v632, %v633
    %v635 = vmul.f32 %v634, %v478
    %v636 = vadd.f32 %v635, 1e-05
    %v637 = vrsqrt.pop %v636
    %v638 = vmul.f32 %v637, %v636
    %v639 = vmul.f32 %v638, %v637
    %v640 = vmul.f32 0.5, %v639
    %v641 = vsub.f32 1.5, %v640
    %v642 = vmul.f32 %v637, %v641
    %vm643 = vweird.f32 %v636
    %vm644 = vweird.f32 %v637
    %vm645 = vmor %vm643, %vm644
    %v646 = vsel %vm645, %v637, %v642
    %v647 = vmul.f32 %v626, %v646
    %v648 = vld [vmem:[%s7 + $0x6] ss:$0 sm:$0xff]
    %v649 = vmul.f32 %v647, %v648
    %v650 = vld [vmem:[%s7 + $0x7] ss:$0 sm:$0xff]
    %v651 = vadd.f32 %v649, %v650
    %v652 = vmax.f32 %v651, 0.0
    %v653 = vld [vmem:[%s6] sm:$0xff]
    %v654 = vld [vmem:[%s6 + $0x8] sm:$0xff]
    %v655 = vld [vmem:[%s6 + $0x10] sm:$0xff]
    %v656 = vld [vmem:[%s6 + $0x18] sm:$0xff]
    %v657 = vld [vmem:[%s6 + $0x20] sm:$0xff]
    %v658 = vld [vmem:[%s6 + $0x28] sm:$0xff]
    %v659 = vld [vmem:[%s6 + $0x30] sm:$0x3]
    %v660 = vld [vmem:[%s7 + $0x10] ss:$0 sm:$0xff]
    %vm661 = vcmask 408576
    %v663 = vsel %vm661, %v652, 0
    %v666 = vsel %vm456, %v659, 0
    %668 = vmatpush.msra.mxu0 0.0
    %669 = vmatpush.msra.mxu0 0.0
    %670 = vmatpush.msra.mxu0 0.0
    %671 = vmatpush.msra.mxu0 0.0
    %672 = vmatpush.msra.mxu0 0.0
    %673 = vmatpush.msra.mxu0 0.0
    %674 = vmatpush.msra.mxu0 0.0
    %675 = vmatpush.msra.mxu0 0.0
    %676 = vmatpush.msra.mxu0 0.0
    %677 = vmatpush.msra.mxu0 %v666
    %678 = vmatpush.msra.mxu0 %v658
    %679 = vmatpush.msra.mxu0 %v657
    %680 = vmatpush.msra.mxu0 %v656
    %681 = vmatpush.msra.mxu0 %v655
    %682 = vmatpush.msra.mxu0 %v654
    %683 = vmatpush.msra.mxu0 %v653
    %684 = vmatmul.f32.gmra.mxu0 %v663
    %v685 = vpop.f32.mrf.mxu0
    %v686 = vadd.f32 %v660, %v685
    %687 = vdwg.mxu0
    %vm688 = vcmask 25600
    %689 = vst.msk [vmem:[#allocation2] sm:$0x3] %vm688, %v686
    // Predicated region
    $region34: #{state_vision_forward.1} parent=1 // pred_check
      _
    $region35: #{state_vision_forward.1} parent=1 // pred_check_branch
      %691 = sbr.rel (0) target = $region37
    $region36: #{state_vision_forward.1} parent=1 // pred_region
      %693 = vsyncadd [#allocation3], 0
      %s695 = sshll.u32 [#allocation2], 4
      %s696 = int_to_ptr.vmem [resolvable:$true] %s695
      %s697 = sshll.u32 %s8, 4
      %s698 = int_to_ptr.hbm [resolvable:$true] %s697
      %700 = dma.vmem_to_hbm [thread:$0]  %s696, 32, %s698, [#allocation3]
    $region37: #{state_vision_forward.1} parent=1 // pred_fallthru
      _
    // Predicated region
    $region38: #{state_vision_forward.1} parent=1 // pred_check
      _
    $region39: #{state_vision_forward.1} parent=1 // pred_check_branch
      %702 = sbr.rel (0) target = $region41
    $region40: #{state_vision_forward.1} parent=1 // pred_region
      %704 = dma.done [#allocation3], 32
    $region41: #{state_vision_forward.1} parent=1 // pred_fallthru
      _
    %705 = vsyncpa [#allocation3], 1

</llo_original>
